<compile_context>
chip_gen: v5e
topology: v5e:2x2
jax: 0.10.0
libtpu: 0.0.40
codegen_flags: <defaults>
</compile_context>

<pallas_src>
import functools

import jax
import jax.numpy as jnp
import numpy as np
from jax.experimental import pallas as pl
from jax.experimental.pallas import tpu as pltpu


def conv_matrix_kernel(x_ref, w2_ref, bias_ref, out_ref, *, M, eps):
    # x_ref:    (B, M)         VMEM  input batch (row b = vector x of the PyTorch code)
    # w2_ref:   ((M-1)*M, M)   VMEM  gamma-folded conv weights, j=0 block dropped
    # bias_ref: (1, M)         VMEM  conv bias with beta + j=0 channel folded in
    # out_ref:  (B, M)         VMEM
    x = x_ref[...]
    B = x.shape[0]
    inv_n = 1.0 / (B * M)                       # BN stats are over (batch, i)

    # Even powers x**(2j) for j = 1..M-1 (j=0 is the all-ones channel: after the
    # gamma/beta fold its normalized value is exactly 0, so it is entirely in bias).
    x2 = x * x
    powers = [x2]
    for _ in range(M - 2):
        powers.append(powers[-1] * x2)

    # Per-channel BN stats as independent one-pass reductions:
    #   var = E[p^2] - mean^2  (safe: even powers are bounded, non-cancelling)
    normed = []
    for p in powers:
        mean = jnp.sum(p) * inv_n
        mean_sq = jnp.sum(p * p) * inv_n
        rstd = jax.lax.rsqrt(mean_sq - mean * mean + eps)
        normed.append((p - mean) * rstd)

    # One lane-concat + a single MXU matmul (K = (M-1)*M) instead of M tiny matmuls.
    u = jnp.concatenate(normed, axis=-1)        # (B, (M-1)*M)
    out_ref[...] = (
        jnp.dot(u, w2_ref[...], preferred_element_type=jnp.float32) + bias_ref[...]
    )


def conv_matrix_layer_forward(x, gamma, beta, w_conv, b_conv, *, eps=1e-5):
    """x: (B, M); gamma/beta: (M,); w_conv: (M, M*M); b_conv: (M,) -> (B, M)."""
    B, M = x.shape
    assert M >= 2, "M >= 2 expected (M=1 degenerates to a constant output)"

    # W_conv[o, c] with c = j*M + i  ->  w3[j, i, o]
    w3 = jnp.transpose(jnp.reshape(w_conv, (M, M, M)), (1, 2, 0))

    # Fold BN affine (gamma, beta) and the constant j=0 channel into weights/bias:
    #   out[b,o] = sum_{j>=1,i} (gamma[j]*W)[j,i,o] * (U[b,j,i]-mean_j)*rstd_j
    #              + ( b_conv[o] + sum_{j,i} beta[j]*W[j,i,o] )
    w2 = (gamma[1:, None, None] * w3[1:]).reshape((M - 1) * M, M)
    bias = b_conv + jnp.einsum("j,jio->o", beta, w3)

    kernel = functools.partial(conv_matrix_kernel, M=M, eps=eps)
    return pl.pallas_call(
        kernel,
        out_shape=jax.ShapeDtypeStruct((B, M), jnp.float32),
        in_specs=[
            pl.BlockSpec(memory_space=pltpu.MemorySpace.VMEM),   # x
            pl.BlockSpec(memory_space=pltpu.MemorySpace.VMEM),   # w2
            pl.BlockSpec(memory_space=pltpu.MemorySpace.VMEM),   # bias
        ],
        out_specs=pl.BlockSpec(memory_space=pltpu.MemorySpace.VMEM),
    )(x, w2, jnp.reshape(bias, (1, M)))


def reference_forward(x, gamma, beta, w_conv, b_conv, eps=1e-5):
    """Pure-JAX reference matching the PyTorch forward (training-mode BN)."""
    B, M = x.shape
    x2 = x * x
    rows, cur = [], jnp.ones_like(x)
    for _ in range(M):
        rows.append(cur)
        cur = cur * x2
    U = jnp.stack(rows, axis=1)                                  # (B, M, M)
    mean = jnp.mean(U, axis=(0, 2), keepdims=True)
    var = jnp.mean((U - mean) ** 2, axis=(0, 2), keepdims=True)  # biased variance
    Un = (U - mean) * jax.lax.rsqrt(var + eps) * gamma[None, :, None] \
         + beta[None, :, None]
    return Un.reshape(B, M * M) @ w_conv.T + b_conv


if __name__ == "__main__":
    B, M = 8, 8   # batch_size=8, M=8  (conv: in_channels=M**2=64, out_channels=M=8)

    key = jax.random.PRNGKey(0)
    kx, kw, kb, kg, kbeta = jax.random.split(key, 5)

    x = jax.random.uniform(kx, (B, M), dtype=jnp.float32, minval=-1.0, maxval=1.0)
    # non-trivial BN affine parameters to exercise the gamma/beta folding
    gamma = 1.0 + 0.1 * jax.random.normal(kg, (M,), dtype=jnp.float32)
    beta = 0.1 * jax.random.normal(kbeta, (M,), dtype=jnp.float32)
    w_conv = 0.1 * jax.random.normal(kw, (M, M * M), dtype=jnp.float32)
    b_conv = 0.1 * jax.random.normal(kb, (M,), dtype=jnp.float32)

    out = conv_matrix_layer_forward(x, gamma, beta, w_conv, b_conv)
    out = jax.block_until_ready(out)

    ref = reference_forward(x, gamma, beta, w_conv, b_conv)
    np.testing.assert_allclose(np.asarray(out), np.asarray(ref),
                               rtol=1e-4, atol=1e-4)

    print("KERNEL_OK")
</pallas_src>

<mosaic_0001>
module attributes {stable_mosaic.version = 11 : i64} {
  func.func @conv_matrix_kernel(%arg0: memref<8x8xf32, #tpu.memory_space<vmem>>, %arg1: memref<56x8xf32, #tpu.memory_space<vmem>>, %arg2: memref<1x8xf32, #tpu.memory_space<vmem>>, %arg3: memref<8x8xf32, #tpu.memory_space<vmem>>) attributes {dimension_semantics = [], scalar_prefetch = 0 : i64, scratch_operands = 0 : i64, tpu.core_type = #tpu.core_type<tc>} {
    %c0 = arith.constant 0 : index
    %c0_0 = arith.constant 0 : index
    %0 = vector.load %arg0[%c0, %c0_0] : memref<8x8xf32, #tpu.memory_space<vmem>>, vector<8x8xf32>
    %1 = arith.mulf %0, %0 : vector<8x8xf32>
    %2 = arith.mulf %1, %1 : vector<8x8xf32>
    %3 = arith.mulf %2, %1 : vector<8x8xf32>
    %4 = arith.mulf %3, %1 : vector<8x8xf32>
    %5 = arith.mulf %4, %1 : vector<8x8xf32>
    %6 = arith.mulf %5, %1 : vector<8x8xf32>
    %7 = arith.mulf %6, %1 : vector<8x8xf32>
    %8 = vector.shape_cast %1 : vector<8x8xf32> to vector<1x8x8xf32>
    %cst = arith.constant dense<0.000000e+00> : vector<1xf32>
    %9 = vector.multi_reduction <add>, %8, %cst [1, 2] : vector<1x8x8xf32> to vector<1xf32>
    %10 = vector.shape_cast %9 : vector<1xf32> to vector<1x1x1xf32>
    %11 = vector.extract %10[0, 0, 0] : f32 from vector<1x1x1xf32>
    %cst_1 = arith.constant 1.562500e-02 : f32
    %12 = arith.mulf %11, %cst_1 : f32
    %13 = arith.mulf %1, %1 : vector<8x8xf32>
    %14 = vector.shape_cast %13 : vector<8x8xf32> to vector<1x8x8xf32>
    %cst_2 = arith.constant dense<0.000000e+00> : vector<1xf32>
    %15 = vector.multi_reduction <add>, %14, %cst_2 [1, 2] : vector<1x8x8xf32> to vector<1xf32>
    %16 = vector.shape_cast %15 : vector<1xf32> to vector<1x1x1xf32>
    %17 = vector.extract %16[0, 0, 0] : f32 from vector<1x1x1xf32>
    %cst_3 = arith.constant 1.562500e-02 : f32
    %18 = arith.mulf %17, %cst_3 : f32
    %19 = arith.mulf %12, %12 : f32
    %20 = arith.subf %18, %19 : f32
    %cst_4 = arith.constant 9.99999974E-6 : f32
    %21 = arith.addf %20, %cst_4 : f32
    %22 = math.rsqrt %21 : f32
    %23 = vector.broadcast %12 : f32 to vector<8x8xf32>
    %24 = arith.subf %1, %23 : vector<8x8xf32>
    %25 = vector.broadcast %22 : f32 to vector<8x8xf32>
    %26 = arith.mulf %24, %25 : vector<8x8xf32>
    %27 = vector.shape_cast %2 : vector<8x8xf32> to vector<1x8x8xf32>
    %cst_5 = arith.constant dense<0.000000e+00> : vector<1xf32>
    %28 = vector.multi_reduction <add>, %27, %cst_5 [1, 2] : vector<1x8x8xf32> to vector<1xf32>
    %29 = vector.shape_cast %28 : vector<1xf32> to vector<1x1x1xf32>
    %30 = vector.extract %29[0, 0, 0] : f32 from vector<1x1x1xf32>
    %cst_6 = arith.constant 1.562500e-02 : f32
    %31 = arith.mulf %30, %cst_6 : f32
    %32 = arith.mulf %2, %2 : vector<8x8xf32>
    %33 = vector.shape_cast %32 : vector<8x8xf32> to vector<1x8x8xf32>
    %cst_7 = arith.constant dense<0.000000e+00> : vector<1xf32>
    %34 = vector.multi_reduction <add>, %33, %cst_7 [1, 2] : vector<1x8x8xf32> to vector<1xf32>
    %35 = vector.shape_cast %34 : vector<1xf32> to vector<1x1x1xf32>
    %36 = vector.extract %35[0, 0, 0] : f32 from vector<1x1x1xf32>
    %cst_8 = arith.constant 1.562500e-02 : f32
    %37 = arith.mulf %36, %cst_8 : f32
    %38 = arith.mulf %31, %31 : f32
    %39 = arith.subf %37, %38 : f32
    %cst_9 = arith.constant 9.99999974E-6 : f32
    %40 = arith.addf %39, %cst_9 : f32
    %41 = math.rsqrt %40 : f32
    %42 = vector.broadcast %31 : f32 to vector<8x8xf32>
    %43 = arith.subf %2, %42 : vector<8x8xf32>
    %44 = vector.broadcast %41 : f32 to vector<8x8xf32>
    %45 = arith.mulf %43, %44 : vector<8x8xf32>
    %46 = vector.shape_cast %3 : vector<8x8xf32> to vector<1x8x8xf32>
    %cst_10 = arith.constant dense<0.000000e+00> : vector<1xf32>
    %47 = vector.multi_reduction <add>, %46, %cst_10 [1, 2] : vector<1x8x8xf32> to vector<1xf32>
    %48 = vector.shape_cast %47 : vector<1xf32> to vector<1x1x1xf32>
    %49 = vector.extract %48[0, 0, 0] : f32 from vector<1x1x1xf32>
    %cst_11 = arith.constant 1.562500e-02 : f32
    %50 = arith.mulf %49, %cst_11 : f32
    %51 = arith.mulf %3, %3 : vector<8x8xf32>
    %52 = vector.shape_cast %51 : vector<8x8xf32> to vector<1x8x8xf32>
    %cst_12 = arith.constant dense<0.000000e+00> : vector<1xf32>
    %53 = vector.multi_reduction <add>, %52, %cst_12 [1, 2] : vector<1x8x8xf32> to vector<1xf32>
    %54 = vector.shape_cast %53 : vector<1xf32> to vector<1x1x1xf32>
    %55 = vector.extract %54[0, 0, 0] : f32 from vector<1x1x1xf32>
    %cst_13 = arith.constant 1.562500e-02 : f32
    %56 = arith.mulf %55, %cst_13 : f32
    %57 = arith.mulf %50, %50 : f32
    %58 = arith.subf %56, %57 : f32
    %cst_14 = arith.constant 9.99999974E-6 : f32
    %59 = arith.addf %58, %cst_14 : f32
    %60 = math.rsqrt %59 : f32
    %61 = vector.broadcast %50 : f32 to vector<8x8xf32>
    %62 = arith.subf %3, %61 : vector<8x8xf32>
    %63 = vector.broadcast %60 : f32 to vector<8x8xf32>
    %64 = arith.mulf %62, %63 : vector<8x8xf32>
    %65 = vector.shape_cast %4 : vector<8x8xf32> to vector<1x8x8xf32>
    %cst_15 = arith.constant dense<0.000000e+00> : vector<1xf32>
    %66 = vector.multi_reduction <add>, %65, %cst_15 [1, 2] : vector<1x8x8xf32> to vector<1xf32>
    %67 = vector.shape_cast %66 : vector<1xf32> to vector<1x1x1xf32>
    %68 = vector.extract %67[0, 0, 0] : f32 from vector<1x1x1xf32>
    %cst_16 = arith.constant 1.562500e-02 : f32
    %69 = arith.mulf %68, %cst_16 : f32
    %70 = arith.mulf %4, %4 : vector<8x8xf32>
    %71 = vector.shape_cast %70 : vector<8x8xf32> to vector<1x8x8xf32>
    %cst_17 = arith.constant dense<0.000000e+00> : vector<1xf32>
    %72 = vector.multi_reduction <add>, %71, %cst_17 [1, 2] : vector<1x8x8xf32> to vector<1xf32>
    %73 = vector.shape_cast %72 : vector<1xf32> to vector<1x1x1xf32>
    %74 = vector.extract %73[0, 0, 0] : f32 from vector<1x1x1xf32>
    %cst_18 = arith.constant 1.562500e-02 : f32
    %75 = arith.mulf %74, %cst_18 : f32
    %76 = arith.mulf %69, %69 : f32
    %77 = arith.subf %75, %76 : f32
    %cst_19 = arith.constant 9.99999974E-6 : f32
    %78 = arith.addf %77, %cst_19 : f32
    %79 = math.rsqrt %78 : f32
    %80 = vector.broadcast %69 : f32 to vector<8x8xf32>
    %81 = arith.subf %4, %80 : vector<8x8xf32>
    %82 = vector.broadcast %79 : f32 to vector<8x8xf32>
    %83 = arith.mulf %81, %82 : vector<8x8xf32>
    %84 = vector.shape_cast %5 : vector<8x8xf32> to vector<1x8x8xf32>
    %cst_20 = arith.constant dense<0.000000e+00> : vector<1xf32>
    %85 = vector.multi_reduction <add>, %84, %cst_20 [1, 2] : vector<1x8x8xf32> to vector<1xf32>
    %86 = vector.shape_cast %85 : vector<1xf32> to vector<1x1x1xf32>
    %87 = vector.extract %86[0, 0, 0] : f32 from vector<1x1x1xf32>
    %cst_21 = arith.constant 1.562500e-02 : f32
    %88 = arith.mulf %87, %cst_21 : f32
    %89 = arith.mulf %5, %5 : vector<8x8xf32>
    %90 = vector.shape_cast %89 : vector<8x8xf32> to vector<1x8x8xf32>
    %cst_22 = arith.constant dense<0.000000e+00> : vector<1xf32>
    %91 = vector.multi_reduction <add>, %90, %cst_22 [1, 2] : vector<1x8x8xf32> to vector<1xf32>
    %92 = vector.shape_cast %91 : vector<1xf32> to vector<1x1x1xf32>
    %93 = vector.extract %92[0, 0, 0] : f32 from vector<1x1x1xf32>
    %cst_23 = arith.constant 1.562500e-02 : f32
    %94 = arith.mulf %93, %cst_23 : f32
    %95 = arith.mulf %88, %88 : f32
    %96 = arith.subf %94, %95 : f32
    %cst_24 = arith.constant 9.99999974E-6 : f32
    %97 = arith.addf %96, %cst_24 : f32
    %98 = math.rsqrt %97 : f32
    %99 = vector.broadcast %88 : f32 to vector<8x8xf32>
    %100 = arith.subf %5, %99 : vector<8x8xf32>
    %101 = vector.broadcast %98 : f32 to vector<8x8xf32>
    %102 = arith.mulf %100, %101 : vector<8x8xf32>
    %103 = vector.shape_cast %6 : vector<8x8xf32> to vector<1x8x8xf32>
    %cst_25 = arith.constant dense<0.000000e+00> : vector<1xf32>
    %104 = vector.multi_reduction <add>, %103, %cst_25 [1, 2] : vector<1x8x8xf32> to vector<1xf32>
    %105 = vector.shape_cast %104 : vector<1xf32> to vector<1x1x1xf32>
    %106 = vector.extract %105[0, 0, 0] : f32 from vector<1x1x1xf32>
    %cst_26 = arith.constant 1.562500e-02 : f32
    %107 = arith.mulf %106, %cst_26 : f32
    %108 = arith.mulf %6, %6 : vector<8x8xf32>
    %109 = vector.shape_cast %108 : vector<8x8xf32> to vector<1x8x8xf32>
    %cst_27 = arith.constant dense<0.000000e+00> : vector<1xf32>
    %110 = vector.multi_reduction <add>, %109, %cst_27 [1, 2] : vector<1x8x8xf32> to vector<1xf32>
    %111 = vector.shape_cast %110 : vector<1xf32> to vector<1x1x1xf32>
    %112 = vector.extract %111[0, 0, 0] : f32 from vector<1x1x1xf32>
    %cst_28 = arith.constant 1.562500e-02 : f32
    %113 = arith.mulf %112, %cst_28 : f32
    %114 = arith.mulf %107, %107 : f32
    %115 = arith.subf %113, %114 : f32
    %cst_29 = arith.constant 9.99999974E-6 : f32
    %116 = arith.addf %115, %cst_29 : f32
    %117 = math.rsqrt %116 : f32
    %118 = vector.broadcast %107 : f32 to vector<8x8xf32>
    %119 = arith.subf %6, %118 : vector<8x8xf32>
    %120 = vector.broadcast %117 : f32 to vector<8x8xf32>
    %121 = arith.mulf %119, %120 : vector<8x8xf32>
    %122 = vector.shape_cast %7 : vector<8x8xf32> to vector<1x8x8xf32>
    %cst_30 = arith.constant dense<0.000000e+00> : vector<1xf32>
    %123 = vector.multi_reduction <add>, %122, %cst_30 [1, 2] : vector<1x8x8xf32> to vector<1xf32>
    %124 = vector.shape_cast %123 : vector<1xf32> to vector<1x1x1xf32>
    %125 = vector.extract %124[0, 0, 0] : f32 from vector<1x1x1xf32>
    %cst_31 = arith.constant 1.562500e-02 : f32
    %126 = arith.mulf %125, %cst_31 : f32
    %127 = arith.mulf %7, %7 : vector<8x8xf32>
    %128 = vector.shape_cast %127 : vector<8x8xf32> to vector<1x8x8xf32>
    %cst_32 = arith.constant dense<0.000000e+00> : vector<1xf32>
    %129 = vector.multi_reduction <add>, %128, %cst_32 [1, 2] : vector<1x8x8xf32> to vector<1xf32>
    %130 = vector.shape_cast %129 : vector<1xf32> to vector<1x1x1xf32>
    %131 = vector.extract %130[0, 0, 0] : f32 from vector<1x1x1xf32>
    %cst_33 = arith.constant 1.562500e-02 : f32
    %132 = arith.mulf %131, %cst_33 : f32
    %133 = arith.mulf %126, %126 : f32
    %134 = arith.subf %132, %133 : f32
    %cst_34 = arith.constant 9.99999974E-6 : f32
    %135 = arith.addf %134, %cst_34 : f32
    %136 = math.rsqrt %135 : f32
    %137 = vector.broadcast %126 : f32 to vector<8x8xf32>
    %138 = arith.subf %7, %137 : vector<8x8xf32>
    %139 = vector.broadcast %136 : f32 to vector<8x8xf32>
    %140 = arith.mulf %138, %139 : vector<8x8xf32>
    %141 = tpu.concatenate %26, %45, %64, %83, %102, %121, %140 in 1 : vector<8x8xf32>, vector<8x8xf32>, vector<8x8xf32>, vector<8x8xf32>, vector<8x8xf32>, vector<8x8xf32>, vector<8x8xf32> -> vector<8x56xf32>
    %c0_35 = arith.constant 0 : index
    %c0_36 = arith.constant 0 : index
    %142 = vector.load %arg1[%c0_35, %c0_36] : memref<56x8xf32, #tpu.memory_space<vmem>>, vector<56x8xf32>
    %cst_37 = arith.constant dense<0.000000e+00> : vector<8x8xf32>
    %143 = tpu.matmul %141, %142, %cst_37 {dimension_numbers = #tpu.dot_dimension_numbers<[1], [0], [0], [1], [0, 0, 1, 1], [], []>} : vector<8x56xf32>, vector<56x8xf32>, vector<8x8xf32> -> vector<8x8xf32>
    %c0_38 = arith.constant 0 : index
    %c0_39 = arith.constant 0 : index
    %144 = vector.load %arg2[%c0_38, %c0_39] : memref<1x8xf32, #tpu.memory_space<vmem>>, vector<1x8xf32>
    %145 = vector.broadcast %144 : vector<1x8xf32> to vector<8x8xf32>
    %146 = arith.addf %143, %145 : vector<8x8xf32>
    %c0_40 = arith.constant 0 : index
    %c0_41 = arith.constant 0 : index
    %147 = vector.load %arg3[%c0_40, %c0_41] : memref<8x8xf32, #tpu.memory_space<vmem>>, vector<8x8xf32>
    tpu.vector_store %arg3[%c0_40, %c0_41], %146 {strides = array<i32>} : memref<8x8xf32, #tpu.memory_space<vmem>>, vector<8x8xf32>,
    return
  }
}

</mosaic_0001>

<llo_original>
// kernel: tpu_custom_call.1
$region0: #{tpu_custom_call.1}
  #allocation0 [shape = 'u32[]', space=smem, size = 0x4, offset = 0x4, fixed_abs, tag = 'smem constant byte address 0x4 - core index']
  #allocation1 [shape = 'u32[72,128]{1,0:T(1,128)}', space=vmem, size = 0x9000, scoped, tag = 'internal scratch']
  %s0 = inlined_call_operand.vmem [shape: f32[8,8], index: 0, kind: input, shape index: {}]
  %s1 = inlined_call_operand.vmem [shape: f32[56,8], index: 1, kind: input, shape index: {}]
  %s2 = inlined_call_operand.vmem [shape: f32[1,8], index: 2, kind: input, shape index: {}]
  %s3 = inlined_call_operand.hbm [shape: f32[8,8], index: 3, kind: output, shape index: {}]
  %s4 = sld [smem:[#allocation0]]
  $region22: #{tpu_custom_call.1} parent=0
    _
  %s6 = ssub.s32 1, %s4
  %s7 = scalar_select 0, %s6, %s4
  $region1: #{tpu_custom_call.1} parent=0
    #allocation2 [shape = 'u8[4096]{0}', space=vmem, size = 0x1000, scoped, tag = 'output window, operand 0, single buffered']
    #allocation3 [shape = 's32[1]{0}', space=sflag, size = 0x4, scoped, tag = 'scoped memory for tpu_custom_call.1']
    %8 = vsyncpa [#allocation3], 0
    // Predicated region
    $region2: #{tpu_custom_call.1} parent=1 // pred_check
      _
    $region3: #{tpu_custom_call.1} parent=1 // pred_check_branch
      %10 = sbr.rel (0) target = $region5
    $region4: #{tpu_custom_call.1} parent=1 // pred_region
      _
    $region5: #{tpu_custom_call.1} parent=1 // pred_fallthru
      _
    // Predicated region
    $region6: #{tpu_custom_call.1} parent=1 // pred_check
      _
    $region7: #{tpu_custom_call.1} parent=1 // pred_check_branch
      %12 = sbr.rel (0) target = $region9
    $region8: #{tpu_custom_call.1} parent=1 // pred_region
      _
    $region9: #{tpu_custom_call.1} parent=1 // pred_fallthru
      _
    // Predicated region
    $region10: #{tpu_custom_call.1} parent=1 // pred_check
      _
    $region11: #{tpu_custom_call.1} parent=1 // pred_check_branch
      %14 = sbr.rel (0) target = $region13
    $region12: #{tpu_custom_call.1} parent=1 // pred_region
      _
    $region13: #{tpu_custom_call.1} parent=1 // pred_fallthru
      _
    %v15 = vld [vmem:[%s0] sm:$0xff]
    %v16 = vmul.f32 %v15, %v15
    %v17 = vmul.f32 %v16, %v16
    %v18 = vmul.f32 %v17, %v16
    %v19 = vmul.f32 %v18, %v16
    %v20 = vmul.f32 %v19, %v16
    %v21 = vmul.f32 %v20, %v16
    %v22 = vmul.f32 %v21, %v16
    %vm23 = vcmask 64512
    %v24 = vsel %vm23, %v16, 0.0
    %25 = vadd.xlane.f32.xlu0 %v24
    %v26 = vpop.xlane.xlu0 %25
    %v27 = vrot.slane %v26, 4
    %v28 = vadd.f32 %v26, %v27
    %v29 = vrot.slane %v28, 2
    %v30 = vadd.f32 %v28, %v29
    %v31 = vrot.slane %v30, 1
    %v32 = vadd.f32 %v30, %v31
    %s33 = vtos %v32
    %s34 = smul.f32 %s33, 0.015625
    %v35 = vsel %vm23, %v17, 0.0
    %36 = vadd.xlane.f32.xlu0 %v35
    %v37 = vpop.xlane.xlu0 %36
    %v38 = vrot.slane %v37, 4
    %v39 = vadd.f32 %v37, %v38
    %v40 = vrot.slane %v39, 2
    %v41 = vadd.f32 %v39, %v40
    %v42 = vrot.slane %v41, 1
    %v43 = vadd.f32 %v41, %v42
    %s44 = vtos %v43
    %s45 = smul.f32 %s44, 0.015625
    %s46 = smul.f32 %s34, %s34
    %s47 = ssub.f32 %s45, %s46
    %s48 = sadd.f32 %s47, 1e-05
    %v49 = vstv %s48
    %v50 = vrsqrt.pop %v49
    %v51 = vmul.f32 %v50, %v49
    %v52 = vmul.f32 %v51, %v50
    %v53 = vmul.f32 0.5, %v52
    %v54 = vsub.f32 1.5, %v53
    %v55 = vmul.f32 %v50, %v54
    %vm56 = vweird.f32 %v49
    %vm57 = vweird.f32 %v50
    %vm58 = vmor %vm56, %vm57
    %v59 = vsel %vm58, %v50, %v55
    %s60 = vtos %v59
    %v61 = vstv %s34
    %v62 = vsub.f32 %v16, %v61
    %v63 = vstv %s60
    %v64 = vmul.f32 %v62, %v63
    %v65 = vmul.f32 %v17, %v17
    %v66 = vsel %vm23, %v65, 0.0
    %67 = vadd.xlane.f32.xlu0 %v66
    %v68 = vpop.xlane.xlu0 %67
    %v69 = vrot.slane %v68, 4
    %v70 = vadd.f32 %v68, %v69
    %v71 = vrot.slane %v70, 2
    %v72 = vadd.f32 %v70, %v71
    %v73 = vrot.slane %v72, 1
    %v74 = vadd.f32 %v72, %v73
    %s75 = vtos %v74
    %s76 = smul.f32 %s75, 0.015625
    %s77 = smul.f32 %s45, %s45
    %s78 = ssub.f32 %s76, %s77
    %s79 = sadd.f32 %s78, 1e-05
    %v80 = vstv %s79
    %v81 = vrsqrt.pop %v80
    %v82 = vmul.f32 %v81, %v80
    %v83 = vmul.f32 %v82, %v81
    %v84 = vmul.f32 0.5, %v83
    %v85 = vsub.f32 1.5, %v84
    %v86 = vmul.f32 %v81, %v85
    %vm87 = vweird.f32 %v80
    %vm88 = vweird.f32 %v81
    %vm89 = vmor %vm87, %vm88
    %v90 = vsel %vm89, %v81, %v86
    %s91 = vtos %v90
    %v92 = vstv %s45
    %v93 = vsub.f32 %v17, %v92
    %v94 = vstv %s91
    %v95 = vmul.f32 %v93, %v94
    %v96 = vsel %vm23, %v18, 0.0
    %97 = vadd.xlane.f32.xlu0 %v96
    %v98 = vpop.xlane.xlu0 %97
    %v99 = vrot.slane %v98, 4
    %v100 = vadd.f32 %v98, %v99
    %v101 = vrot.slane %v100, 2
    %v102 = vadd.f32 %v100, %v101
    %v103 = vrot.slane %v102, 1
    %v104 = vadd.f32 %v102, %v103
    %s105 = vtos %v104
    %s106 = smul.f32 %s105, 0.015625
    %v107 = vmul.f32 %v18, %v18
    %v108 = vsel %vm23, %v107, 0.0
    %109 = vadd.xlane.f32.xlu0 %v108
    %v110 = vpop.xlane.xlu0 %109
    %v111 = vrot.slane %v110, 4
    %v112 = vadd.f32 %v110, %v111
    %v113 = vrot.slane %v112, 2
    %v114 = vadd.f32 %v112, %v113
    %v115 = vrot.slane %v114, 1
    %v116 = vadd.f32 %v114, %v115
    %s117 = vtos %v116
    %s118 = smul.f32 %s117, 0.015625
    %s119 = smul.f32 %s106, %s106
    %s120 = ssub.f32 %s118, %s119
    %s121 = sadd.f32 %s120, 1e-05
    %v122 = vstv %s121
    %v123 = vrsqrt.pop %v122
    %v124 = vmul.f32 %v123, %v122
    %v125 = vmul.f32 %v124, %v123
    %v126 = vmul.f32 0.5, %v125
    %v127 = vsub.f32 1.5, %v126
    %v128 = vmul.f32 %v123, %v127
    %vm129 = vweird.f32 %v122
    %vm130 = vweird.f32 %v123
    %vm131 = vmor %vm129, %vm130
    %v132 = vsel %vm131, %v123, %v128
    %s133 = vtos %v132
    %v134 = vstv %s106
    %v135 = vsub.f32 %v18, %v134
    %v136 = vstv %s133
    %v137 = vmul.f32 %v135, %v136
    %v138 = vsel %vm23, %v19, 0.0
    %139 = vadd.xlane.f32.xlu0 %v138
    %v140 = vpop.xlane.xlu0 %139
    %v141 = vrot.slane %v140, 4
    %v142 = vadd.f32 %v140, %v141
    %v143 = vrot.slane %v142, 2
    %v144 = vadd.f32 %v142, %v143
    %v145 = vrot.slane %v144, 1
    %v146 = vadd.f32 %v144, %v145
    %s147 = vtos %v146
    %s148 = smul.f32 %s147, 0.015625
    %v149 = vmul.f32 %v19, %v19
    %v150 = vsel %vm23, %v149, 0.0
    %151 = vadd.xlane.f32.xlu0 %v150
    %v152 = vpop.xlane.xlu0 %151
    %v153 = vrot.slane %v152, 4
    %v154 = vadd.f32 %v152, %v153
    %v155 = vrot.slane %v154, 2
    %v156 = vadd.f32 %v154, %v155
    %v157 = vrot.slane %v156, 1
    %v158 = vadd.f32 %v156, %v157
    %s159 = vtos %v158
    %s160 = smul.f32 %s159, 0.015625
    %s161 = smul.f32 %s148, %s148
    %s162 = ssub.f32 %s160, %s161
    %s163 = sadd.f32 %s162, 1e-05
    %v164 = vstv %s163
    %v165 = vrsqrt.pop %v164
    %v166 = vmul.f32 %v165, %v164
    %v167 = vmul.f32 %v166, %v165
    %v168 = vmul.f32 0.5, %v167
    %v169 = vsub.f32 1.5, %v168
    %v170 = vmul.f32 %v165, %v169
    %vm171 = vweird.f32 %v164
    %vm172 = vweird.f32 %v165
    %vm173 = vmor %vm171, %vm172
    %v174 = vsel %vm173, %v165, %v170
    %s175 = vtos %v174
    %v176 = vstv %s148
    %v177 = vsub.f32 %v19, %v176
    %v178 = vstv %s175
    %v179 = vmul.f32 %v177, %v178
    %v180 = vsel %vm23, %v20, 0.0
    %181 = vadd.xlane.f32.xlu0 %v180
    %v182 = vpop.xlane.xlu0 %181
    %v183 = vrot.slane %v182, 4
    %v184 = vadd.f32 %v182, %v183
    %v185 = vrot.slane %v184, 2
    %v186 = vadd.f32 %v184, %v185
    %v187 = vrot.slane %v186, 1
    %v188 = vadd.f32 %v186, %v187
    %s189 = vtos %v188
    %s190 = smul.f32 %s189, 0.015625
    %v191 = vmul.f32 %v20, %v20
    %v192 = vsel %vm23, %v191, 0.0
    %193 = vadd.xlane.f32.xlu0 %v192
    %v194 = vpop.xlane.xlu0 %193
    %v195 = vrot.slane %v194, 4
    %v196 = vadd.f32 %v194, %v195
    %v197 = vrot.slane %v196, 2
    %v198 = vadd.f32 %v196, %v197
    %v199 = vrot.slane %v198, 1
    %v200 = vadd.f32 %v198, %v199
    %s201 = vtos %v200
    %s202 = smul.f32 %s201, 0.015625
    %s203 = smul.f32 %s190, %s190
    %s204 = ssub.f32 %s202, %s203
    %s205 = sadd.f32 %s204, 1e-05
    %v206 = vstv %s205
    %v207 = vrsqrt.pop %v206
    %v208 = vmul.f32 %v207, %v206
    %v209 = vmul.f32 %v208, %v207
    %v210 = vmul.f32 0.5, %v209
    %v211 = vsub.f32 1.5, %v210
    %v212 = vmul.f32 %v207, %v211
    %vm213 = vweird.f32 %v206
    %vm214 = vweird.f32 %v207
    %vm215 = vmor %vm213, %vm214
    %v216 = vsel %vm215, %v207, %v212
    %s217 = vtos %v216
    %v218 = vstv %s190
    %v219 = vsub.f32 %v20, %v218
    %v220 = vstv %s217
    %v221 = vmul.f32 %v219, %v220
    %v222 = vsel %vm23, %v21, 0.0
    %223 = vadd.xlane.f32.xlu0 %v222
    %v224 = vpop.xlane.xlu0 %223
    %v225 = vrot.slane %v224, 4
    %v226 = vadd.f32 %v224, %v225
    %v227 = vrot.slane %v226, 2
    %v228 = vadd.f32 %v226, %v227
    %v229 = vrot.slane %v228, 1
    %v230 = vadd.f32 %v228, %v229
    %s231 = vtos %v230
    %s232 = smul.f32 %s231, 0.015625
    %v233 = vmul.f32 %v21, %v21
    %v234 = vsel %vm23, %v233, 0.0
    %235 = vadd.xlane.f32.xlu0 %v234
    %v236 = vpop.xlane.xlu0 %235
    %v237 = vrot.slane %v236, 4
    %v238 = vadd.f32 %v236, %v237
    %v239 = vrot.slane %v238, 2
    %v240 = vadd.f32 %v238, %v239
    %v241 = vrot.slane %v240, 1
    %v242 = vadd.f32 %v240, %v241
    %s243 = vtos %v242
    %s244 = smul.f32 %s243, 0.015625
    %s245 = smul.f32 %s232, %s232
    %s246 = ssub.f32 %s244, %s245
    %s247 = sadd.f32 %s246, 1e-05
    %v248 = vstv %s247
    %v249 = vrsqrt.pop %v248
    %v250 = vmul.f32 %v249, %v248
    %v251 = vmul.f32 %v250, %v249
    %v252 = vmul.f32 0.5, %v251
    %v253 = vsub.f32 1.5, %v252
    %v254 = vmul.f32 %v249, %v253
    %vm255 = vweird.f32 %v248
    %vm256 = vweird.f32 %v249
    %vm257 = vmor %vm255, %vm256
    %v258 = vsel %vm257, %v249, %v254
    %s259 = vtos %v258
    %v260 = vstv %s232
    %v261 = vsub.f32 %v21, %v260
    %v262 = vstv %s259
    %v263 = vmul.f32 %v261, %v262
    %v264 = vsel %vm23, %v22, 0.0
    %265 = vadd.xlane.f32.xlu0 %v264
    %v266 = vpop.xlane.xlu0 %265
    %v267 = vrot.slane %v266, 4
    %v268 = vadd.f32 %v266, %v267
    %v269 = vrot.slane %v268, 2
    %v270 = vadd.f32 %v268, %v269
    %v271 = vrot.slane %v270, 1
    %v272 = vadd.f32 %v270, %v271
    %s273 = vtos %v272
    %s274 = smul.f32 %s273, 0.015625
    %v275 = vmul.f32 %v22, %v22
    %v276 = vsel %vm23, %v275, 0.0
    %277 = vadd.xlane.f32.xlu0 %v276
    %v278 = vpop.xlane.xlu0 %277
    %v279 = vrot.slane %v278, 4
    %v280 = vadd.f32 %v278, %v279
    %v281 = vrot.slane %v280, 2
    %v282 = vadd.f32 %v280, %v281
    %v283 = vrot.slane %v282, 1
    %v284 = vadd.f32 %v282, %v283
    %s285 = vtos %v284
    %s286 = smul.f32 %s285, 0.015625
    %s287 = smul.f32 %s274, %s274
    %s288 = ssub.f32 %s286, %s287
    %s289 = sadd.f32 %s288, 1e-05
    %v290 = vstv %s289
    %v291 = vrsqrt.pop %v290
    %v292 = vmul.f32 %v291, %v290
    %v293 = vmul.f32 %v292, %v291
    %v294 = vmul.f32 0.5, %v293
    %v295 = vsub.f32 1.5, %v294
    %v296 = vmul.f32 %v291, %v295
    %vm297 = vweird.f32 %v290
    %vm298 = vweird.f32 %v291
    %vm299 = vmor %vm297, %vm298
    %v300 = vsel %vm299, %v291, %v296
    %s301 = vtos %v300
    %v302 = vstv %s274
    %v303 = vsub.f32 %v22, %v302
    %v304 = vstv %s301
    %v305 = vmul.f32 %v303, %v304
    %307 = vrot.lane.b32.xlu0 %v95, 8
    %v308 = vpop.permute.xlu0 %307
    %311 = vrot.lane.b32.xlu0 %v137, 16
    %v312 = vpop.permute.xlu0 %311
    %315 = vrot.lane.b32.xlu0 %v179, 24
    %v316 = vpop.permute.xlu0 %315
    %319 = vrot.lane.b32.xlu0 %v221, 32
    %v320 = vpop.permute.xlu0 %319
    %323 = vrot.lane.b32.xlu0 %v263, 40
    %v324 = vpop.permute.xlu0 %323
    %327 = vrot.lane.b32.xlu0 %v305, 48
    %v328 = vpop.permute.xlu0 %327
    %v330 = vsel %vm23, %v64, %v308
    %vm331 = vcmask 130048
    %v332 = vsel %vm331, %v330, %v312
    %vm333 = vcmask 195584
    %v334 = vsel %vm333, %v332, %v316
    %vm335 = vcmask 261120
    %v336 = vsel %vm335, %v334, %v320
    %vm337 = vcmask 326656
    %v338 = vsel %vm337, %v336, %v324
    %vm339 = vcmask 392192
    %v340 = vsel %vm339, %v338, %v328
    %v341 = vld [vmem:[%s1] sm:$0xff]
    %v342 = vld [vmem:[%s1 + $0x8] sm:$0xff]
    %v343 = vld [vmem:[%s1 + $0x10] sm:$0xff]
    %v344 = vld [vmem:[%s1 + $0x18] sm:$0xff]
    %v345 = vld [vmem:[%s1 + $0x20] sm:$0xff]
    %v346 = vld [vmem:[%s1 + $0x28] sm:$0xff]
    %v347 = vld [vmem:[%s1 + $0x30] sm:$0xff]
    %v348 = vld [vmem:[%s2] sm:$0x1]
    %v350 = vperm.slane %v348, 0
    %vm352 = vcmask 457728
    %v354 = vsel %vm352, %v340, 0
    %356 = vmatpush.msra.mxu0 0.0
    %357 = vmatpush.msra.mxu0 0.0
    %358 = vmatpush.msra.mxu0 0.0
    %359 = vmatpush.msra.mxu0 0.0
    %360 = vmatpush.msra.mxu0 0.0
    %361 = vmatpush.msra.mxu0 0.0
    %362 = vmatpush.msra.mxu0 0.0
    %363 = vmatpush.msra.mxu0 0.0
    %364 = vmatpush.msra.mxu0 0.0
    %365 = vmatpush.msra.mxu0 %v347
    %366 = vmatpush.msra.mxu0 %v346
    %367 = vmatpush.msra.mxu0 %v345
    %368 = vmatpush.msra.mxu0 %v344
    %369 = vmatpush.msra.mxu0 %v343
    %370 = vmatpush.msra.mxu0 %v342
    %371 = vmatpush.msra.mxu0 %v341
    %372 = vmatmul.f32.gmra.mxu0 %v354
    %v373 = vpop.f32.mrf.mxu0
    %v374 = vadd.f32 %v350, %v373
    %375 = vdwg.mxu0
    %376 = vst.msk [vmem:[#allocation2] sm:$0xff] %vm23, %v374
    // Predicated region
    $region14: #{tpu_custom_call.1} parent=1 // pred_check
      _
    $region15: #{tpu_custom_call.1} parent=1 // pred_check_branch
      %378 = sbr.rel (0) target = $region17
    $region16: #{tpu_custom_call.1} parent=1 // pred_region
      %380 = vsyncadd [#allocation3], 0
      %s382 = sshll.u32 [#allocation2], 4
      %s383 = int_to_ptr.vmem [resolvable:$true] %s382
      %s384 = sshll.u32 %s3, 4
      %s385 = int_to_ptr.hbm [resolvable:$true] %s384
      %387 = dma.vmem_to_hbm [thread:$0]  %s383, 128, %s385, [#allocation3]
    $region17: #{tpu_custom_call.1} parent=1 // pred_fallthru
      _
    // Predicated region
    $region18: #{tpu_custom_call.1} parent=1 // pred_check
      _
    $region19: #{tpu_custom_call.1} parent=1 // pred_check_branch
      %389 = sbr.rel (0) target = $region21
    $region20: #{tpu_custom_call.1} parent=1 // pred_region
      %391 = dma.done [#allocation3], 128
    $region21: #{tpu_custom_call.1} parent=1 // pred_fallthru
      _
    %392 = vsyncpa [#allocation3], 1

</llo_original>
